<compile_context>
chip_gen: v6e
topology: v6e:2x2x1
jax: 0.10.0
libtpu: 0.0.40
codegen_flags: <defaults>
</compile_context>

<pallas_src>
from functools import partial

import numpy as np
import jax
import jax.numpy as jnp
from jax.experimental import pallas as pl
from jax.experimental.pallas import tpu as pltpu

CLS_ID = 101      # BERT [CLS]
SEP_ID = 102      # BERT [SEP]
PAD_ID = 0        # BERT [PAD]
MAX_LENGTH = 77   # module default


def _pad_truncate_kernel(raw_ref, len_ref, out_ref, *, max_length):
    """out[b] = [CLS] raw[b, :eff_b] [SEP] [PAD]...,  eff_b = min(len_b, R, max_length-2)

    raw_ref : [TB, R]          int32  raw WordPiece ids
    len_ref : [TB, 1]          int32  valid raw-token count per row
    out_ref : [TB, max_length] int32  padded/truncated input_ids
    """
    tb, r = raw_ref.shape
    lengths = len_ref[...]                                        # [TB, 1]
    eff = jnp.minimum(jnp.minimum(lengths, r), max_length - 2)    # [TB, 1]

    # 1) Full-width skeleton: CLS at position 0, SEP at eff+1, PAD elsewhere.
    pos = jax.lax.broadcasted_iota(jnp.int32, (tb, max_length), 1)
    out_ref[...] = jnp.where(
        pos == 0,
        jnp.int32(CLS_ID),
        jnp.where(pos == eff + 1, jnp.int32(SEP_ID), jnp.int32(PAD_ID)),
    )

    # 2) Token window (output columns 1..R): raw ids while rpos < eff, the SEP
    #    if it falls inside the window, PAD after.  A single masked store at a
    #    +1 lane offset realises the shift without pltpu.roll.
    rpos = jax.lax.broadcasted_iota(jnp.int32, (tb, r), 1)
    tok = jnp.where(
        rpos < eff,
        raw_ref[...],
        jnp.where(rpos == eff, jnp.int32(SEP_ID), jnp.int32(PAD_ID)),
    )
    out_ref[:, 1:1 + r] = tok


def bert_tokenizer_forward(raw_ids, lengths, max_length=MAX_LENGTH, block_batch=1024):
    """Numeric part of BERTTokenizer.forward.

    raw_ids : [B, R] int  pre-tokenized WordPiece ids (glue input; the string
                          tokenization itself is not expressible as a kernel).
    lengths : [B]    int  number of valid raw tokens per example.
    returns : [B, max_length] int32 input_ids (PyTorch returns int64; int32 is
                          ample for vocab 30522 and halves output HBM bytes).
    """
    raw_ids = jnp.asarray(raw_ids, jnp.int32)
    lengths = jnp.asarray(lengths, jnp.int32).reshape(-1, 1)
    B, R = raw_ids.shape

    # Only the first max_length-2 raw tokens can ever appear in the output.
    if R > max_length - 2:
        raw_ids = raw_ids[:, : max_length - 2]
        R = max_length - 2

    # Small batches: a single full-array block, no host padding / slicing.
    # Large batches: tile the batch (sublane) axis; "parallel" lets v7x shard
    # the grid across both TensorCores.
    tb = B if B <= block_batch else block_batch
    grid = (pl.cdiv(B, tb),)

    return pl.pallas_call(
        partial(_pad_truncate_kernel, max_length=max_length),
        out_shape=jax.ShapeDtypeStruct((B, max_length), jnp.int32),
        grid=grid,
        in_specs=[
            pl.BlockSpec((tb, R), lambda i: (i, 0)),
            pl.BlockSpec((tb, 1), lambda i: (i, 0)),
        ],
        out_specs=pl.BlockSpec((tb, max_length), lambda i: (i, 0)),
        compiler_params=pltpu.CompilerParams(dimension_semantics=("parallel",)),
    )(raw_ids, lengths)


def _reference(raw_ids, lengths, max_length=MAX_LENGTH):
    raw = np.asarray(raw_ids)
    lens = np.asarray(lengths)
    B, R = raw.shape
    out = np.full((B, max_length), PAD_ID, np.int32)
    for b in range(B):
        L = min(int(lens[b]), R, max_length - 2)
        out[b, 0] = CLS_ID
        out[b, 1:1 + L] = raw[b, :L]
        out[b, 1 + L] = SEP_ID
    return out


if __name__ == "__main__":
    # TODO(synk): HuggingFace BertTokenizerFast (string -> WordPiece ids) is
    # pure string processing with no Pallas equivalent; its output is simulated
    # with deterministic pseudo-random WordPiece ids + per-example lengths.
    key = jax.random.PRNGKey(0)

    batch = 2          # "batch of 2 texts"
    raw_len = 12       # max pre-tokenized length in this synthetic batch
    raw_ids = jax.random.randint(
        key, (batch, raw_len), minval=1000, maxval=30522, dtype=jnp.int32
    )
    lengths = jnp.array([5, 12], dtype=jnp.int32)   # per-example valid counts

    tokens = bert_tokenizer_forward(raw_ids, lengths, max_length=MAX_LENGTH)
    tokens = jax.block_until_ready(tokens)

    expected = _reference(raw_ids, lengths, MAX_LENGTH)
    assert tokens.shape == (batch, MAX_LENGTH), tokens.shape
    assert tokens.dtype == jnp.int32
    np.testing.assert_array_equal(np.asarray(tokens), expected)

    print("KERNEL_OK")
</pallas_src>

<mosaic_0001>
module attributes {stable_mosaic.version = 11 : i64} {
  func.func @_pad_truncate_kernel(%arg0: i32, %arg1: memref<2x12xi32, #tpu.memory_space<vmem>>, %arg2: memref<2x1xi32, #tpu.memory_space<vmem>>, %arg3: memref<2x77xi32, #tpu.memory_space<vmem>>) attributes {dimension_semantics = [#tpu.dimension_semantics<parallel>], iteration_bounds = array<i64: 1>, scalar_prefetch = 0 : i64, scratch_operands = 0 : i64, tpu.core_type = #tpu.core_type<tc>, window_params = [{transform_indices = @transform_0, window_bounds = array<i64: 2, 12>}, {transform_indices = @transform_1, window_bounds = array<i64: 2, 1>}, {transform_indices = @transform_2, window_bounds = array<i64: 2, 77>}]} {
    %c0 = arith.constant 0 : index
    %c0_0 = arith.constant 0 : index
    %0 = vector.load %arg2[%c0, %c0_0] : memref<2x1xi32, #tpu.memory_space<vmem>>, vector<2x1xi32>
    %c12_i32 = arith.constant 12 : i32
    %1 = vector.broadcast %c12_i32 : i32 to vector<2x1xi32>
    %2 = arith.minsi %0, %1 : vector<2x1xi32>
    %c75_i32 = arith.constant 75 : i32
    %3 = vector.broadcast %c75_i32 : i32 to vector<2x1xi32>
    %4 = arith.minsi %2, %3 : vector<2x1xi32>
    %5 = tpu.iota {dimensions = array<i32: 1>} : vector<2x77xi32>
    %c0_i32 = arith.constant 0 : i32
    %6 = vector.broadcast %c0_i32 : i32 to vector<2x77xi32>
    %7 = arith.cmpi eq, %5, %6 : vector<2x77xi32>
    %c1_i32 = arith.constant 1 : i32
    %8 = vector.broadcast %c1_i32 : i32 to vector<2x1xi32>
    %9 = arith.addi %4, %8 : vector<2x1xi32>
    %10 = vector.broadcast %9 : vector<2x1xi32> to vector<2x77xi32>
    %11 = arith.cmpi eq, %5, %10 : vector<2x77xi32>
    %c102_i32 = arith.constant 102 : i32
    %c0_i32_1 = arith.constant 0 : i32
    %12 = vector.broadcast %c102_i32 : i32 to vector<2x77xi32>
    %13 = vector.broadcast %c0_i32_1 : i32 to vector<2x77xi32>
    %14 = arith.select %11, %12, %13 : vector<2x77xi1>, vector<2x77xi32>
    %c101_i32 = arith.constant 101 : i32
    %15 = vector.broadcast %c101_i32 : i32 to vector<2x77xi32>
    %16 = arith.select %7, %15, %14 : vector<2x77xi1>, vector<2x77xi32>
    %c0_2 = arith.constant 0 : index
    %c0_3 = arith.constant 0 : index
    %17 = vector.load %arg3[%c0_2, %c0_3] : memref<2x77xi32, #tpu.memory_space<vmem>>, vector<2x77xi32>
    tpu.vector_store %arg3[%c0_2, %c0_3], %16 {strides = array<i32>} : memref<2x77xi32, #tpu.memory_space<vmem>>, vector<2x77xi32>,
    %18 = tpu.iota {dimensions = array<i32: 1>} : vector<2x12xi32>
    %19 = vector.broadcast %4 : vector<2x1xi32> to vector<2x12xi32>
    %20 = arith.cmpi slt, %18, %19 : vector<2x12xi32>
    %c0_4 = arith.constant 0 : index
    %c0_5 = arith.constant 0 : index
    %21 = vector.load %arg1[%c0_4, %c0_5] : memref<2x12xi32, #tpu.memory_space<vmem>>, vector<2x12xi32>
    %22 = vector.broadcast %4 : vector<2x1xi32> to vector<2x12xi32>
    %23 = arith.cmpi eq, %18, %22 : vector<2x12xi32>
    %c102_i32_6 = arith.constant 102 : i32
    %c0_i32_7 = arith.constant 0 : i32
    %24 = vector.broadcast %c102_i32_6 : i32 to vector<2x12xi32>
    %25 = vector.broadcast %c0_i32_7 : i32 to vector<2x12xi32>
    %26 = arith.select %23, %24, %25 : vector<2x12xi1>, vector<2x12xi32>
    %27 = arith.select %20, %21, %26 : vector<2x12xi1>, vector<2x12xi32>
    %c0_8 = arith.constant 0 : index
    %c1 = arith.constant 1 : index
    %28 = vector.load %arg3[%c0_8, %c1] : memref<2x77xi32, #tpu.memory_space<vmem>>, vector<2x12xi32>
    tpu.vector_store %arg3[%c0_8, %c1], %27 {strides = array<i32>} : memref<2x77xi32, #tpu.memory_space<vmem>>, vector<2x12xi32>,
    return
  }
  func.func @transform_0(%arg0: i32) -> (i32, i32) {
    %c0_i32 = arith.constant 0 : i32
    %c0_i32_0 = arith.constant 0 : i32
    return %arg0, %c0_i32 : i32, i32
  }
  func.func @transform_1(%arg0: i32) -> (i32, i32) {
    %c0_i32 = arith.constant 0 : i32
    %c0_i32_0 = arith.constant 0 : i32
    return %arg0, %c0_i32 : i32, i32
  }
  func.func @transform_2(%arg0: i32) -> (i32, i32) {
    %c0_i32 = arith.constant 0 : i32
    %c0_i32_0 = arith.constant 0 : i32
    return %arg0, %c0_i32 : i32, i32
  }
}

</mosaic_0001>

<llo_original>
// kernel: tpu_custom_call.1
$region0: #{tpu_custom_call.1}
  #allocation0 [shape = 'u32[]', space=smem, size = 0x4, offset = 0x4, fixed_abs, tag = 'smem constant byte address 0x4 - core index']
  #allocation1 [shape = 'u32[144,128]{1,0:T(1,128)}', space=vmem, size = 0x12000, scoped, tag = 'internal scratch']
  %s0 = inlined_call_operand.vmem [shape: s32[2,12], index: 0, kind: input, shape index: {}]
  %s1 = inlined_call_operand.vmem [shape: s32[2,1], index: 1, kind: input, shape index: {}]
  %s2 = inlined_call_operand.hbm [shape: s32[2,77], index: 2, kind: output, shape index: {}]
  %s3 = sld [smem:[#allocation0]]
  $region18: #{tpu_custom_call.1} parent=0
    _
  %s5 = ssub.s32 1, %s3
  %s6 = scalar_select 0, %s5, %s3
  $region1: #{tpu_custom_call.1} parent=0
    #allocation2 [shape = 'u8[1024]{0}', space=vmem, size = 0x400, scoped, tag = 'output window, operand 0, single buffered']
    #allocation3 [shape = 's32[1]{0}', space=sflag, size = 0x4, scoped, tag = 'scoped memory for tpu_custom_call.1']
    %7 = vsyncpa [#allocation3], 0
    // Predicated region
    $region2: #{tpu_custom_call.1} parent=1 // pred_check
      _
    $region3: #{tpu_custom_call.1} parent=1 // pred_check_branch
      %9 = sbr.rel (0) target = $region5
    $region4: #{tpu_custom_call.1} parent=1 // pred_region
      _
    $region5: #{tpu_custom_call.1} parent=1 // pred_fallthru
      _
    // Predicated region
    $region6: #{tpu_custom_call.1} parent=1 // pred_check
      _
    $region7: #{tpu_custom_call.1} parent=1 // pred_check_branch
      %11 = sbr.rel (0) target = $region9
    $region8: #{tpu_custom_call.1} parent=1 // pred_region
      _
    $region9: #{tpu_custom_call.1} parent=1 // pred_fallthru
      _
    %v12 = vld [vmem:[%s1] sm:$0x3]
    %vm13 = vcmp.lt.s32.totalorder %v12, 12
    %v14 = vsel %vm13, %v12, 12
    %vm15 = vcmp.lt.s32.totalorder %v14, 75
    %v16 = vsel %vm15, %v14, 75
    %v17 = vlaneseq
    %v18 = vand.u32 %v17, 127
    %vm19 = vcmp.eq.s32.totalorder %v18, 0
    %v20 = vadd.s32 %v16, 1
    %21 = vset.pattern.permute.xlu0 0
    %22 = vperm.xlu0 %21, %v20
    %v23 = vpop.permute.xlu0 %22
    %vm24 = vcmp.eq.s32.totalorder %v18, %v23
    %v25 = vsel %vm24, 102, 0
    %v26 = vsel %vm19, 101, %v25
    %vm27 = vcmask 623616
    %28 = vst.msk [vmem:[#allocation2] sm:$0x3] %vm27, %v26
    %29 = vset.pattern.permute.xlu0 0
    %30 = vperm.xlu0 %29, %v16
    %v31 = vpop.permute.xlu0 %30
    %vm32 = vcmp.lt.s32.totalorder %v18, %v31
    %v33 = vld [vmem:[%s0] sm:$0x3]
    %vm34 = vcmp.eq.s32.totalorder %v18, %v31
    %v35 = vsel %vm34, 102, 0
    %v36 = vsel %vm32, %v33, %v35
    %37 = vrot.lane.b32.xlu0 %v36, 1
    %v38 = vpop.permute.xlu0 %37
    %vm39 = vcmask 99336
    %40 = vst.msk [vmem:[#allocation2] sm:$0x3] %vm39, %v38
    // Predicated region
    $region10: #{tpu_custom_call.1} parent=1 // pred_check
      _
    $region11: #{tpu_custom_call.1} parent=1 // pred_check_branch
      %42 = sbr.rel (0) target = $region13
    $region12: #{tpu_custom_call.1} parent=1 // pred_region
      %s44 = ssub.s32 32, 32
      %45 = vsyncadd [#allocation3], %s44
      %s47 = sshll.u32 [#allocation2], 4
      %s48 = int_to_ptr.vmem [resolvable:$true] %s47
      %50 = dma.vmem_to_hbm [thread:$0]  %s48, 32, %s2, [#allocation3]
    $region13: #{tpu_custom_call.1} parent=1 // pred_fallthru
      _
    // Predicated region
    $region14: #{tpu_custom_call.1} parent=1 // pred_check
      _
    $region15: #{tpu_custom_call.1} parent=1 // pred_check_branch
      %52 = sbr.rel (0) target = $region17
    $region16: #{tpu_custom_call.1} parent=1 // pred_region
      %53 = dma.done [#allocation3], 32
    $region17: #{tpu_custom_call.1} parent=1 // pred_fallthru
      _
    %54 = vsyncpa [#allocation3], 1

</llo_original>
